<compile_context>
chip_gen: v5e
topology: v5e:2x2
jax: 0.10.0
libtpu: 0.0.40
codegen_flags: <defaults>
</compile_context>

<pallas_src>
import jax
import jax.numpy as jnp
from jax.experimental import pallas as pl
from jax.experimental.pallas import tpu as pltpu

LANE = 128     # vreg lane width (last dim)
SUBLANE = 8    # f32 sublane count (second-to-last dim)


def _round_up(n, m):
    return ((n + m - 1) // m) * m


def classifier_kernel(x_ref, w1_ref, b1_ref, w2_ref, b2_ref, w3_ref, b3_ref, o_ref):
    # fc1 + ReLU (MXU matmul, f32 accumulation; bias/ReLU in f32 on the VPU).
    h1 = jnp.dot(x_ref[...], w1_ref[...], preferred_element_type=jnp.float32)
    h1 = jnp.maximum(h1 + b1_ref[...], 0.0)
    # fc2 + ReLU.
    h2 = jnp.dot(h1.astype(w2_ref.dtype), w2_ref[...], preferred_element_type=jnp.float32)
    h2 = jnp.maximum(h2 + b2_ref[...], 0.0)
    # fc3 (hidden -> 1): VPU multiply + lane reduction instead of an N=1 MXU
    # matmul (avoids a 1-lane-wide MXU result tile serializing behind fc1/fc2).
    w3_row = w3_ref[...].astype(jnp.float32)                       # (1, hidden_p)
    logits = jnp.sum(h2 * w3_row, axis=-1, keepdims=True) + b3_ref[...]
    # TODO(synk): for store-bound very-large-batch cases, emit a lane-dense
    # output slab instead of a last-dim-1 block (masked vst is fine at (TB,1)).
    o_ref[...] = jax.nn.sigmoid(logits).astype(o_ref.dtype)


def init_params(key, inputs, hidden_size):
    """Deterministic init mimicking torch.nn.Linear's U(-1/sqrt(fan_in), 1/sqrt(fan_in)).
    Weights stored (in_features, out_features) so the kernel does x @ W + b."""
    ks = jax.random.split(key, 6)

    def lin(kw, kb, fan_in, fan_out):
        bound = 1.0 / jnp.sqrt(fan_in)
        w = jax.random.uniform(kw, (fan_in, fan_out), jnp.float32, -bound, bound)
        b = jax.random.uniform(kb, (1, fan_out), jnp.float32, -bound, bound)
        return w, b

    w1, b1 = lin(ks[0], ks[1], inputs, hidden_size)
    w2, b2 = lin(ks[2], ks[3], hidden_size, hidden_size)
    w3, b3 = lin(ks[4], ks[5], hidden_size, 1)
    return {"w1": w1, "b1": b1, "w2": w2, "b2": b2, "w3": w3, "b3": b3}


def prepare_params(params, matmul_dtype=jnp.float32):
    """One-time host-side prep: zero-pad feature dims to lane multiples, store
    w3 as a (1, hidden_p) row for the lane reduction, cast matmul weights."""
    w1, b1 = params["w1"], params["b1"]
    w2, b2 = params["w2"], params["b2"]
    w3, b3 = params["w3"], params["b3"]

    in_orig, hid_orig = w1.shape
    in_p = _round_up(in_orig, LANE)
    hid_p = _round_up(hid_orig, LANE)

    w1p = jnp.zeros((in_p, hid_p), jnp.float32).at[:in_orig, :hid_orig].set(w1)
    b1p = jnp.zeros((1, hid_p), jnp.float32).at[:, :hid_orig].set(b1)
    w2p = jnp.zeros((hid_p, hid_p), jnp.float32).at[:hid_orig, :hid_orig].set(w2)
    b2p = jnp.zeros((1, hid_p), jnp.float32).at[:, :hid_orig].set(b2)
    w3p = jnp.zeros((1, hid_p), jnp.float32).at[0, :hid_orig].set(w3[:, 0])
    b3p = b3.reshape(1, 1).astype(jnp.float32)

    return {
        "w1": w1p.astype(matmul_dtype), "b1": b1p,          # biases stay f32
        "w2": w2p.astype(matmul_dtype), "b2": b2p,
        "w3": w3p.astype(matmul_dtype), "b3": b3p,
        "in_padded": in_p, "hid_padded": hid_p, "in_orig": in_orig,
    }


def classifier_forward(x, prep, *, batch_tile=512):
    """x: (B, inputs) float32. prep: output of prepare_params. Returns (B, 1) f32."""
    B, f_in = x.shape
    assert f_in == prep["in_orig"], "input feature dim mismatch"
    in_p, hid_p = prep["in_padded"], prep["hid_padded"]
    matmul_dtype = prep["w1"].dtype

    # Batch tile: multiple of the f32 sublane count, capped at batch_tile rows.
    tb = min(_round_up(batch_tile, SUBLANE), _round_up(B, SUBLANE))
    n_tiles = pl.cdiv(B, tb)
    b_pad = n_tiles * tb

    # Zero-pad batch rows and input features (exact: padded rows are sliced off,
    # padded feature columns hit zero weight rows).
    xp = jnp.zeros((b_pad, in_p), matmul_dtype).at[:B, :f_in].set(x.astype(matmul_dtype))

    # Explicit VMEM budget: resident weights + double-buffered x/out tiles +
    # in-kernel activations + headroom, capped below v7x's 64 MiB physical VMEM.
    wsize = jnp.dtype(matmul_dtype).itemsize
    weight_bytes = (in_p * hid_p + hid_p * hid_p + hid_p) * wsize + (2 * hid_p + 1) * 4
    io_bytes = 2 * (tb * in_p * wsize + tb * 1 * 4)      # 2x buffers for x + out
    act_bytes = 2 * tb * hid_p * 4                       # h1, h2 in f32
    vmem_limit = int(min(max(weight_bytes + io_bytes + act_bytes + (4 << 20), 16 << 20), 48 << 20))

    def resident(shape):                                  # constant index_map -> stays in VMEM
        return pl.BlockSpec(shape, lambda i: (0, 0))

    out = pl.pallas_call(
        classifier_kernel,
        out_shape=jax.ShapeDtypeStruct((b_pad, 1), jnp.float32),
        grid=(n_tiles,),
        in_specs=[
            pl.BlockSpec((tb, in_p), lambda i: (i, 0)),   # x: tiled along batch
            resident((in_p, hid_p)),                      # w1
            resident((1, hid_p)),                         # b1
            resident((hid_p, hid_p)),                     # w2
            resident((1, hid_p)),                         # b2
            resident((1, hid_p)),                         # w3 (row form)
            resident((1, 1)),                             # b3
        ],
        out_specs=pl.BlockSpec((tb, 1), lambda i: (i, 0)),
        compiler_params=pltpu.CompilerParams(
            dimension_semantics=("parallel",),            # megacore split on v7x
            vmem_limit_bytes=vmem_limit,
        ),
    )(xp, prep["w1"], prep["b1"], prep["w2"], prep["b2"], prep["w3"], prep["b3"])

    return out[:B]


if __name__ == "__main__":
    INPUTS = 32
    HIDDEN = 32
    BATCH = 8

    key = jax.random.PRNGKey(0)
    kx, kp = jax.random.split(key)
    x = jax.random.normal(kx, (BATCH, INPUTS), dtype=jnp.float32)
    params = init_params(kp, INPUTS, HIDDEN)

    # Pure-JAX reference (matches the PyTorch forward).
    h1 = jnp.maximum(x @ params["w1"] + params["b1"], 0.0)
    h2 = jnp.maximum(h1 @ params["w2"] + params["b2"], 0.0)
    ref = jax.nn.sigmoid(h2 @ params["w3"] + params["b3"])

    # 1) f32 MXU operands (exact).
    prep32 = prepare_params(params, matmul_dtype=jnp.float32)
    out32 = jax.block_until_ready(classifier_forward(x, prep32))
    assert out32.shape == (BATCH, 1)
    assert jnp.allclose(out32, ref, atol=1e-5), "f32 kernel mismatch vs reference"

    # 2) bf16 MXU operands, f32 accumulation (v5e/v6e MXU fast path).
    prep16 = prepare_params(params, matmul_dtype=jnp.bfloat16)
    out16 = jax.block_until_ready(classifier_forward(x, prep16))
    assert out16.shape == (BATCH, 1)
    assert jnp.allclose(out16, ref, atol=2e-2), "bf16 kernel mismatch vs reference"

    print("KERNEL_OK")
</pallas_src>

<mosaic_0001>
module attributes {stable_mosaic.version = 11 : i64} {
  func.func @classifier_kernel(%arg0: i32, %arg1: memref<8x128xf32, #tpu.memory_space<vmem>>, %arg2: memref<128x128xf32, #tpu.memory_space<vmem>>, %arg3: memref<1x128xf32, #tpu.memory_space<vmem>>, %arg4: memref<128x128xf32, #tpu.memory_space<vmem>>, %arg5: memref<1x128xf32, #tpu.memory_space<vmem>>, %arg6: memref<1x128xf32, #tpu.memory_space<vmem>>, %arg7: memref<1x1xf32, #tpu.memory_space<vmem>>, %arg8: memref<8x1xf32, #tpu.memory_space<vmem>>) attributes {dimension_semantics = [#tpu.dimension_semantics<parallel>], iteration_bounds = array<i64: 1>, scalar_prefetch = 0 : i64, scratch_operands = 0 : i64, tpu.core_type = #tpu.core_type<tc>, window_params = [{transform_indices = @transform_0, window_bounds = array<i64: 8, 128>}, {pipeline_mode = #tpu.pipeline_mode<synchronous>, transform_indices = @transform_1, window_bounds = array<i64: 128, 128>}, {pipeline_mode = #tpu.pipeline_mode<synchronous>, transform_indices = @transform_2, window_bounds = array<i64: 1, 128>}, {pipeline_mode = #tpu.pipeline_mode<synchronous>, transform_indices = @transform_3, window_bounds = array<i64: 128, 128>}, {pipeline_mode = #tpu.pipeline_mode<synchronous>, transform_indices = @transform_4, window_bounds = array<i64: 1, 128>}, {pipeline_mode = #tpu.pipeline_mode<synchronous>, transform_indices = @transform_5, window_bounds = array<i64: 1, 128>}, {pipeline_mode = #tpu.pipeline_mode<synchronous>, transform_indices = @transform_6, window_bounds = array<i64: 1, 1>}, {transform_indices = @transform_7, window_bounds = array<i64: 8, 1>}]} {
    %c0 = arith.constant 0 : index
    %c0_0 = arith.constant 0 : index
    %0 = vector.load %arg1[%c0, %c0_0] : memref<8x128xf32, #tpu.memory_space<vmem>>, vector<8x128xf32>
    %c0_1 = arith.constant 0 : index
    %c0_2 = arith.constant 0 : index
    %1 = vector.load %arg2[%c0_1, %c0_2] : memref<128x128xf32, #tpu.memory_space<vmem>>, vector<128x128xf32>
    %cst = arith.constant dense<0.000000e+00> : vector<8x128xf32>
    %2 = tpu.matmul %0, %1, %cst {dimension_numbers = #tpu.dot_dimension_numbers<[1], [0], [0], [1], [0, 0, 1, 1], [], []>} : vector<8x128xf32>, vector<128x128xf32>, vector<8x128xf32> -> vector<8x128xf32>
    %c0_3 = arith.constant 0 : index
    %c0_4 = arith.constant 0 : index
    %3 = vector.load %arg3[%c0_3, %c0_4] : memref<1x128xf32, #tpu.memory_space<vmem>>, vector<1x128xf32>
    %4 = vector.broadcast %3 : vector<1x128xf32> to vector<8x128xf32>
    %5 = arith.addf %2, %4 : vector<8x128xf32>
    %cst_5 = arith.constant 0.000000e+00 : f32
    %6 = vector.broadcast %cst_5 : f32 to vector<8x128xf32>
    %7 = arith.maximumf %5, %6 : vector<8x128xf32>
    %c0_6 = arith.constant 0 : index
    %c0_7 = arith.constant 0 : index
    %8 = vector.load %arg4[%c0_6, %c0_7] : memref<128x128xf32, #tpu.memory_space<vmem>>, vector<128x128xf32>
    %cst_8 = arith.constant dense<0.000000e+00> : vector<8x128xf32>
    %9 = tpu.matmul %7, %8, %cst_8 {dimension_numbers = #tpu.dot_dimension_numbers<[1], [0], [0], [1], [0, 0, 1, 1], [], []>} : vector<8x128xf32>, vector<128x128xf32>, vector<8x128xf32> -> vector<8x128xf32>
    %c0_9 = arith.constant 0 : index
    %c0_10 = arith.constant 0 : index
    %10 = vector.load %arg5[%c0_9, %c0_10] : memref<1x128xf32, #tpu.memory_space<vmem>>, vector<1x128xf32>
    %11 = vector.broadcast %10 : vector<1x128xf32> to vector<8x128xf32>
    %12 = arith.addf %9, %11 : vector<8x128xf32>
    %cst_11 = arith.constant 0.000000e+00 : f32
    %13 = vector.broadcast %cst_11 : f32 to vector<8x128xf32>
    %14 = arith.maximumf %12, %13 : vector<8x128xf32>
    %c0_12 = arith.constant 0 : index
    %c0_13 = arith.constant 0 : index
    %15 = vector.load %arg6[%c0_12, %c0_13] : memref<1x128xf32, #tpu.memory_space<vmem>>, vector<1x128xf32>
    %16 = vector.broadcast %15 : vector<1x128xf32> to vector<8x128xf32>
    %17 = arith.mulf %14, %16 : vector<8x128xf32>
    %cst_14 = arith.constant dense<0.000000e+00> : vector<8xf32>
    %18 = vector.multi_reduction <add>, %17, %cst_14 [1] : vector<8x128xf32> to vector<8xf32>
    %19 = vector.shape_cast %18 : vector<8xf32> to vector<8x1xf32>
    %c0_15 = arith.constant 0 : index
    %c0_16 = arith.constant 0 : index
    %20 = vector.load %arg7[%c0_15, %c0_16] : memref<1x1xf32, #tpu.memory_space<vmem>>, vector<1x1xf32>
    %21 = vector.broadcast %20 : vector<1x1xf32> to vector<8x1xf32>
    %22 = arith.addf %19, %21 : vector<8x1xf32>
    %23 = arith.negf %22 : vector<8x1xf32>
    %24 = math.exp %23 : vector<8x1xf32>
    %cst_17 = arith.constant 1.000000e+00 : f32
    %25 = vector.broadcast %cst_17 : f32 to vector<8x1xf32>
    %26 = arith.addf %25, %24 : vector<8x1xf32>
    %27 = arith.divf %25, %26 : vector<8x1xf32>
    %c0_18 = arith.constant 0 : index
    %c0_19 = arith.constant 0 : index
    %28 = vector.load %arg8[%c0_18, %c0_19] : memref<8x1xf32, #tpu.memory_space<vmem>>, vector<8x1xf32>
    tpu.vector_store %arg8[%c0_18, %c0_19], %27 {strides = array<i32>} : memref<8x1xf32, #tpu.memory_space<vmem>>, vector<8x1xf32>,
    return
  }
  func.func @transform_0(%arg0: i32) -> (i32, i32) {
    %c0_i32 = arith.constant 0 : i32
    %c0_i32_0 = arith.constant 0 : i32
    return %arg0, %c0_i32 : i32, i32
  }
  func.func @transform_1(%arg0: i32) -> (i32, i32) {
    %c0_i32 = arith.constant 0 : i32
    %c0_i32_0 = arith.constant 0 : i32
    %c0_i32_1 = arith.constant 0 : i32
    return %c0_i32, %c0_i32_0 : i32, i32
  }
  func.func @transform_2(%arg0: i32) -> (i32, i32) {
    %c0_i32 = arith.constant 0 : i32
    %c0_i32_0 = arith.constant 0 : i32
    %c0_i32_1 = arith.constant 0 : i32
    return %c0_i32, %c0_i32_0 : i32, i32
  }
  func.func @transform_3(%arg0: i32) -> (i32, i32) {
    %c0_i32 = arith.constant 0 : i32
    %c0_i32_0 = arith.constant 0 : i32
    %c0_i32_1 = arith.constant 0 : i32
    return %c0_i32, %c0_i32_0 : i32, i32
  }
  func.func @transform_4(%arg0: i32) -> (i32, i32) {
    %c0_i32 = arith.constant 0 : i32
    %c0_i32_0 = arith.constant 0 : i32
    %c0_i32_1 = arith.constant 0 : i32
    return %c0_i32, %c0_i32_0 : i32, i32
  }
  func.func @transform_5(%arg0: i32) -> (i32, i32) {
    %c0_i32 = arith.constant 0 : i32
    %c0_i32_0 = arith.constant 0 : i32
    %c0_i32_1 = arith.constant 0 : i32
    return %c0_i32, %c0_i32_0 : i32, i32
  }
  func.func @transform_6(%arg0: i32) -> (i32, i32) {
    %c0_i32 = arith.constant 0 : i32
    %c0_i32_0 = arith.constant 0 : i32
    %c0_i32_1 = arith.constant 0 : i32
    return %c0_i32, %c0_i32_0 : i32, i32
  }
  func.func @transform_7(%arg0: i32) -> (i32, i32) {
    %c0_i32 = arith.constant 0 : i32
    %c0_i32_0 = arith.constant 0 : i32
    return %arg0, %c0_i32 : i32, i32
  }
}

</mosaic_0001>

<llo_original>
// kernel: tpu_custom_call.1
$region0: #{tpu_custom_call.1}
  #allocation0 [shape = 'u32[]', space=smem, size = 0x4, offset = 0x4, fixed_abs, tag = 'smem constant byte address 0x4 - core index']
  #allocation1 [shape = 'u32[72,128]{1,0:T(1,128)}', space=vmem, size = 0x9000, scoped, tag = 'internal scratch']
  #allocation2 [shape = 'f32[1,1]{1,0:T(1,128)S(1)}', space=vmem, size = 0x200, scoped, tag = 'scoped memory for tpu_custom_call.1']
  %s0 = inlined_call_operand.hbm [shape: f32[8,128], index: 0, kind: input, shape index: {}]
  %s1 = inlined_call_operand.hbm [shape: f32[128,128], index: 1, kind: input, shape index: {}]
  %s2 = inlined_call_operand.vmem [shape: f32[1,128], index: 2, kind: input, shape index: {}]
  %s3 = inlined_call_operand.hbm [shape: f32[128,128], index: 3, kind: input, shape index: {}]
  %s4 = inlined_call_operand.vmem [shape: f32[1,128], index: 4, kind: input, shape index: {}]
  %s5 = inlined_call_operand.vmem [shape: f32[1,128], index: 5, kind: input, shape index: {}]
  %s6 = inlined_call_operand.<no memory space> [shape: f32[1,1], index: 6, kind: input, shape index: {}]
  %s7 = inlined_call_operand.vmem [shape: f32[8,1], index: 7, kind: output, shape index: {}]
  %s8 = sld [smem:[#allocation0]]
  $region50: #{tpu_custom_call.1} parent=0
    _
  %s10 = ssub.s32 1, %s8
  %s11 = scalar_select 0, %s10, %s8
  %v12 = vstv %s6
  %13 = vst [vmem:[#allocation2] sm:$0x1] %v12
  $region1: #{tpu_custom_call.1} parent=0
    #allocation3 [shape = 'u8[4096]{0}', space=vmem, size = 0x1000, scoped, tag = 'input window, operand 0, single buffered']
    #allocation4 [shape = 's32[1]{0}', space=sflag, size = 0x4, scoped, tag = 'scoped memory for tpu_custom_call.1']
    #allocation5 [shape = 'u8[65536]{0}', space=vmem, size = 0x10000, scoped, tag = 'input window, operand 1, single buffered']
    #allocation6 [shape = 's32[1]{0}', space=sflag, size = 0x4, scoped, tag = 'scoped memory for tpu_custom_call.1']
    #allocation7 [shape = 'u8[65536]{0}', space=vmem, size = 0x10000, scoped, tag = 'input window, operand 3, single buffered']
    %14 = vsyncpa [#allocation4], 0
    %15 = vsyncpa [#allocation6], 0
    // Predicated region
    $region2: #{tpu_custom_call.1} parent=1 // pred_check
      _
    $region3: #{tpu_custom_call.1} parent=1 // pred_check_branch
      %17 = sbr.rel (0) target = $region5
    $region4: #{tpu_custom_call.1} parent=1 // pred_region
      %19 = vsyncadd [#allocation4], 0
      %s21 = sshll.u32 %s0, 4
      %s22 = int_to_ptr.hbm [resolvable:$true] %s21
      %s23 = sshll.u32 [#allocation3], 4
      %s24 = int_to_ptr.vmem [resolvable:$true] %s23
      %26 = dma.hbm_to_vmem [thread:$0]  %s22, 128, %s24, [#allocation4]
    $region5: #{tpu_custom_call.1} parent=1 // pred_fallthru
      _
    // Predicated region
    $region6: #{tpu_custom_call.1} parent=1 // pred_check
      _
    $region7: #{tpu_custom_call.1} parent=1 // pred_check_branch
      %28 = sbr.rel (0) target = $region9
    $region8: #{tpu_custom_call.1} parent=1 // pred_region
      %30 = vsyncadd [#allocation6], 0
      %s31 = sshll.u32 %s1, 4
      %s32 = int_to_ptr.hbm [resolvable:$true] %s31
      %s33 = sshll.u32 [#allocation5], 4
      %s34 = int_to_ptr.vmem [resolvable:$true] %s33
      %39 = dma.hbm_to_vmem [thread:$0]  %s32, 2048, %s34, [#allocation6], 128, 128, 8
    $region9: #{tpu_custom_call.1} parent=1 // pred_fallthru
      _
    // Predicated region
    $region10: #{tpu_custom_call.1} parent=1 // pred_check
      _
    $region11: #{tpu_custom_call.1} parent=1 // pred_check_branch
      %41 = sbr.rel (0) target = $region13
    $region12: #{tpu_custom_call.1} parent=1 // pred_region
      _
    $region13: #{tpu_custom_call.1} parent=1 // pred_fallthru
      _
    // Predicated region
    $region14: #{tpu_custom_call.1} parent=1 // pred_check
      _
    $region15: #{tpu_custom_call.1} parent=1 // pred_check_branch
      %43 = sbr.rel (0) target = $region17
    $region16: #{tpu_custom_call.1} parent=1 // pred_region
      %45 = vsyncadd [#allocation6], 0
      %s46 = sshll.u32 %s3, 4
      %s47 = int_to_ptr.hbm [resolvable:$true] %s46
      %s48 = sshll.u32 [#allocation7], 4
      %s49 = int_to_ptr.vmem [resolvable:$true] %s48
      %54 = dma.hbm_to_vmem [thread:$0]  %s47, 2048, %s49, [#allocation6], 128, 128, 8
    $region17: #{tpu_custom_call.1} parent=1 // pred_fallthru
      _
    // Predicated region
    $region18: #{tpu_custom_call.1} parent=1 // pred_check
      _
    $region19: #{tpu_custom_call.1} parent=1 // pred_check_branch
      %56 = sbr.rel (0) target = $region21
    $region20: #{tpu_custom_call.1} parent=1 // pred_region
      _
    $region21: #{tpu_custom_call.1} parent=1 // pred_fallthru
      _
    // Predicated region
    $region22: #{tpu_custom_call.1} parent=1 // pred_check
      _
    $region23: #{tpu_custom_call.1} parent=1 // pred_check_branch
      %58 = sbr.rel (0) target = $region25
    $region24: #{tpu_custom_call.1} parent=1 // pred_region
      _
    $region25: #{tpu_custom_call.1} parent=1 // pred_fallthru
      _
    // Predicated region
    $region26: #{tpu_custom_call.1} parent=1 // pred_check
      _
    $region27: #{tpu_custom_call.1} parent=1 // pred_check_branch
      %60 = sbr.rel (0) target = $region29
    $region28: #{tpu_custom_call.1} parent=1 // pred_region
      _
    $region29: #{tpu_custom_call.1} parent=1 // pred_fallthru
      _
    // Predicated region
    $region30: #{tpu_custom_call.1} parent=1 // pred_check
      _
    $region31: #{tpu_custom_call.1} parent=1 // pred_check_branch
      %62 = sbr.rel (0) target = $region33
    $region32: #{tpu_custom_call.1} parent=1 // pred_region
      %64 = dma.done [#allocation4], 128
    $region33: #{tpu_custom_call.1} parent=1 // pred_fallthru
      _
    // Predicated region
    $region34: #{tpu_custom_call.1} parent=1 // pred_check
      _
    $region35: #{tpu_custom_call.1} parent=1 // pred_check_branch
      %66 = sbr.rel (0) target = $region37
    $region36: #{tpu_custom_call.1} parent=1 // pred_region
      %68 = dma.done [#allocation6], 2048
    $region37: #{tpu_custom_call.1} parent=1 // pred_fallthru
      _
    // Predicated region
    $region38: #{tpu_custom_call.1} parent=1 // pred_check
      _
    $region39: #{tpu_custom_call.1} parent=1 // pred_check_branch
      %70 = sbr.rel (0) target = $region41
    $region40: #{tpu_custom_call.1} parent=1 // pred_region
      %72 = dma.done [#allocation6], 2048
    $region41: #{tpu_custom_call.1} parent=1 // pred_fallthru
      _
    %v73 = vld [vmem:[#allocation3] sm:$0xff]
    %v74 = vld [vmem:[#allocation5] sm:$0xff]
    %v75 = vld [vmem:[#allocation5 + $0x8] sm:$0xff]
    %v76 = vld [vmem:[#allocation5 + $0x10] sm:$0xff]
    %v77 = vld [vmem:[#allocation5 + $0x18] sm:$0xff]
    %v78 = vld [vmem:[#allocation5 + $0x20] sm:$0xff]
    %v79 = vld [vmem:[#allocation5 + $0x28] sm:$0xff]
    %v80 = vld [vmem:[#allocation5 + $0x30] sm:$0xff]
    %v81 = vld [vmem:[#allocation5 + $0x38] sm:$0xff]
    %v82 = vld [vmem:[#allocation5 + $0x40] sm:$0xff]
    %v83 = vld [vmem:[#allocation5 + $0x48] sm:$0xff]
    %v84 = vld [vmem:[#allocation5 + $0x50] sm:$0xff]
    %v85 = vld [vmem:[#allocation5 + $0x58] sm:$0xff]
    %v86 = vld [vmem:[#allocation5 + $0x60] sm:$0xff]
    %v87 = vld [vmem:[#allocation5 + $0x68] sm:$0xff]
    %v88 = vld [vmem:[#allocation5 + $0x70] sm:$0xff]
    %v89 = vld [vmem:[#allocation5 + $0x78] sm:$0xff]
    %v90 = vld [vmem:[%s2] sm:$0x1]
    %v92 = vperm.slane %v90, 0
    %94 = vmatpush.msra.mxu0 %v89
    %95 = vmatpush.msra.mxu0 %v88
    %96 = vmatpush.msra.mxu0 %v87
    %97 = vmatpush.msra.mxu0 %v86
    %98 = vmatpush.msra.mxu0 %v85
    %99 = vmatpush.msra.mxu0 %v84
    %100 = vmatpush.msra.mxu0 %v83
    %101 = vmatpush.msra.mxu0 %v82
    %102 = vmatpush.msra.mxu0 %v81
    %103 = vmatpush.msra.mxu0 %v80
    %104 = vmatpush.msra.mxu0 %v79
    %105 = vmatpush.msra.mxu0 %v78
    %106 = vmatpush.msra.mxu0 %v77
    %107 = vmatpush.msra.mxu0 %v76
    %108 = vmatpush.msra.mxu0 %v75
    %109 = vmatpush.msra.mxu0 %v74
    %110 = vmatmul.f32.gmra.mxu0 %v73
    %v111 = vpop.f32.mrf.mxu0
    %v112 = vadd.f32 %v92, %v111
    %113 = vdwg.mxu0
    %v114 = vmax.f32 %v112, 0.0
    %v115 = vld [vmem:[#allocation7] sm:$0xff]
    %v116 = vld [vmem:[#allocation7 + $0x8] sm:$0xff]
    %v117 = vld [vmem:[#allocation7 + $0x10] sm:$0xff]
    %v118 = vld [vmem:[#allocation7 + $0x18] sm:$0xff]
    %v119 = vld [vmem:[#allocation7 + $0x20] sm:$0xff]
    %v120 = vld [vmem:[#allocation7 + $0x28] sm:$0xff]
    %v121 = vld [vmem:[#allocation7 + $0x30] sm:$0xff]
    %v122 = vld [vmem:[#allocation7 + $0x38] sm:$0xff]
    %v123 = vld [vmem:[#allocation7 + $0x40] sm:$0xff]
    %v124 = vld [vmem:[#allocation7 + $0x48] sm:$0xff]
    %v125 = vld [vmem:[#allocation7 + $0x50] sm:$0xff]
    %v126 = vld [vmem:[#allocation7 + $0x58] sm:$0xff]
    %v127 = vld [vmem:[#allocation7 + $0x60] sm:$0xff]
    %v128 = vld [vmem:[#allocation7 + $0x68] sm:$0xff]
    %v129 = vld [vmem:[#allocation7 + $0x70] sm:$0xff]
    %v130 = vld [vmem:[#allocation7 + $0x78] sm:$0xff]
    %v131 = vld [vmem:[%s4] sm:$0x1]
    %v133 = vperm.slane %v131, 0
    %135 = vmatpush.msra.mxu0 %v130
    %136 = vmatpush.msra.mxu0 %v129
    %137 = vmatpush.msra.mxu0 %v128
    %138 = vmatpush.msra.mxu0 %v127
    %139 = vmatpush.msra.mxu0 %v126
    %140 = vmatpush.msra.mxu0 %v125
    %141 = vmatpush.msra.mxu0 %v124
    %142 = vmatpush.msra.mxu0 %v123
    %143 = vmatpush.msra.mxu0 %v122
    %144 = vmatpush.msra.mxu0 %v121
    %145 = vmatpush.msra.mxu0 %v120
    %146 = vmatpush.msra.mxu0 %v119
    %147 = vmatpush.msra.mxu0 %v118
    %148 = vmatpush.msra.mxu0 %v117
    %149 = vmatpush.msra.mxu0 %v116
    %150 = vmatpush.msra.mxu0 %v115
    %151 = vmatmul.f32.gmra.mxu0 %v114
    %v152 = vpop.f32.mrf.mxu0
    %v153 = vadd.f32 %v133, %v152
    %154 = vdwg.mxu0
    %v155 = vmax.f32 %v153, 0.0
    %v156 = vld [vmem:[%s5] sm:$0x1]
    %v158 = vperm.slane %v156, 0
    %v160 = vmul.f32 %v155, %v158
    %161 = vadd.xlane.f32.xlu0 %v160
    %v162 = vpop.xlane.xlu0 %161
    %v163 = vld [vmem:[#allocation2] sm:$0x1]
    %v165 = vperm.slane %v163, 0
    %v167 = vadd.f32 %v162, %v165
    %v168 = vxor.u32 %v167, 2147483648
    %v169 = vmul.f32 %v168, 1.442695
    %v170 = vpow.pop %v169
    %v171 = vadd.f32 %v170, 1.0
    %v172 = vrcp.pop %v171
    %v173 = vmul.f32 %v171, %v172
    %v174 = vsub.f32 1.0, %v173
    %v175 = vmul.f32 %v172, %v174
    %v176 = vadd.f32 %v172, %v175
    %vm177 = vweird.f32 %v171
    %vm178 = vweird.f32 %v172
    %vm179 = vmor %vm177, %vm178
    %v180 = vsel %vm179, %v172, %v176
    %v181 = vand.u32 2147483647, %v171
    %vm182 = vcmp.eq.f32.partialorder %v181, 8.507059e+37
    %v183 = vand.u32 %v171, 2147483648
    %v184 = vor.u32 1.1754944e-38, %v183
    %v185 = vsel %vm182, %v184, %v180
    %v186 = vmul.f32 1.0, %v185
    %vm187 = vcmask 7168
    %188 = vst.msk [vmem:[%s7] sm:$0xff] %vm187, %v186
    // Predicated region
    $region42: #{tpu_custom_call.1} parent=1 // pred_check
      _
    $region43: #{tpu_custom_call.1} parent=1 // pred_check_branch
      %190 = sbr.rel (0) target = $region45
    $region44: #{tpu_custom_call.1} parent=1 // pred_region
      _
    $region45: #{tpu_custom_call.1} parent=1 // pred_fallthru
      _
    // Predicated region
    $region46: #{tpu_custom_call.1} parent=1 // pred_check
      _
    $region47: #{tpu_custom_call.1} parent=1 // pred_check_branch
      %192 = sbr.rel (0) target = $region49
    $region48: #{tpu_custom_call.1} parent=1 // pred_region
      _
    $region49: #{tpu_custom_call.1} parent=1 // pred_fallthru
      _
    %193 = vsyncpa [#allocation4], 1
    %194 = vsyncpa [#allocation6], 1

</llo_original>
